<compile_context>
chip_gen: v6e
topology: v6e:2x2x1
jax: 0.10.0
libtpu: 0.0.40
codegen_flags: <defaults>
</compile_context>

<pallas_src>
import jax
import jax.numpy as jnp
from jax.experimental import pallas as pl
from jax.experimental.pallas import tpu as pltpu


# ---------------------------------------------------------------------------
# Kernel
# ---------------------------------------------------------------------------
def _part_dep_kernel(xa_ref, xb_ref, w1a_ref, w1b_ref, b1_ref, w2_ref, b2_ref, o_ref):
    # xa/xb: (h, thw) pixel slabs (channels on sublanes, pixels on lanes).
    xa = xa_ref[...]
    xb = xb_ref[...]

    # conv1 (1x1, BN1 scale pre-folded into rows), split over the two inputs.
    t = jnp.dot(w1a_ref[...], xa, preferred_element_type=jnp.float32)
    t = t + jnp.dot(w1b_ref[...], xb, preferred_element_type=jnp.float32)
    t = jnp.maximum(t + b1_ref[...], 0.0)          # + BN1 bias, ReLU

    # conv2 (1x1, BN2 scale pre-folded) -> bias -> ReLU
    y = jnp.dot(w2_ref[...], t, preferred_element_type=jnp.float32)
    y = jnp.maximum(y + b2_ref[...], 0.0)

    o_ref[...] = y.astype(o_ref.dtype)             # lane-dense (c_out, thw) store


# ---------------------------------------------------------------------------
# Tile planning (generation-aware via VMEM capacity)
# ---------------------------------------------------------------------------
def _round_up(x, m):
    return ((x + m - 1) // m) * m


def _plan_tiles(N, HW, act_itemsize, c_in, c_out, hard_cap=32768):
    """Pick the spatial tile (pixels), padded HW, tile count and a VMEM limit."""
    try:
        vmem_cap = int(pltpu.get_tpu_info().vmem_capacity_bytes)
    except Exception:
        vmem_cap = 64 * 1024 * 1024          # conservative fallback (v7x-sized)

    r = lambda c: _round_up(max(c, 8), 8)    # sublane padding
    # Per-pixel VMEM footprint: double-buffered input/output slabs (activation
    # dtype) + f32 intermediates the compiler must materialize.
    per_pixel = (2 * r(c_in) + r(c_out)) * act_itemsize * 2 \
                + (r(2 * c_in) + r(c_out)) * 4

    budget = int(vmem_cap * 0.45)            # headroom for weights/compiler scratch
    cap = max(128, min(hard_cap, (budget // per_pixel) // 128 * 128))

    k = max(1, -(-HW // cap))                # number of spatial tiles
    if N * k < 2 and HW > 256:               # keep both v7x TensorCores busy
        k = 2
    thw = min(cap, _round_up(-(-HW // k), 128))
    HW_pad = k * thw

    needed = per_pixel * thw + (2 << 20)     # + weights / biases / slack
    vmem_limit = int(min(0.7 * vmem_cap, max(32 << 20, 1.5 * needed)))
    return thw, HW_pad, k, vmem_limit


# ---------------------------------------------------------------------------
# Wrapper
# ---------------------------------------------------------------------------
def part_dependency_forward(F_dep_hu, hv, params, *, act_dtype=None, max_tile=32768):
    """F_dep_hu, hv: NCHW (N, hidden, H, W). Returns NCHW (N, hidden, H, W)."""
    if act_dtype is not None:                # bf16 path halves HBM traffic
        F_dep_hu = F_dep_hu.astype(act_dtype)
        hv = hv.astype(act_dtype)

    N, h, H, W = F_dep_hu.shape
    HW = H * W
    w1a, w1b, b1 = params["w1a"], params["w1b"], params["b1"]
    w2, b2 = params["w2"], params["b2"]
    c_out = w2.shape[0]

    itemsize = jnp.dtype(F_dep_hu.dtype).itemsize
    thw, HW_pad, n_tiles, vmem_limit = _plan_tiles(
        N, HW, itemsize, h, c_out, hard_cap=max_tile)

    xa = F_dep_hu.reshape(N, h, HW)          # pure view reshape, no transpose
    xb = hv.reshape(N, h, HW)
    if HW_pad > HW:                          # pad to a multiple of the tile
        pad = ((0, 0), (0, 0), (0, HW_pad - HW))
        xa = jnp.pad(xa, pad)
        xb = jnp.pad(xb, pad)

    y = pl.pallas_call(
        _part_dep_kernel,
        out_shape=jax.ShapeDtypeStruct((N, c_out, HW_pad), F_dep_hu.dtype),
        grid_spec=pltpu.PrefetchScalarGridSpec(
            num_scalar_prefetch=0,
            grid=(N, n_tiles),
            in_specs=[
                pl.BlockSpec((None, h, thw), lambda n, p: (n, 0, p)),  # F_dep_hu slab
                pl.BlockSpec((None, h, thw), lambda n, p: (n, 0, p)),  # hv slab
                pl.BlockSpec(w1a.shape, lambda n, p: (0, 0)),          # W1 (F_dep_hu cols)
                pl.BlockSpec(w1b.shape, lambda n, p: (0, 0)),          # W1 (hv cols)
                pl.BlockSpec(b1.shape, lambda n, p: (0, 0)),           # BN1 bias (2h, 1)
                pl.BlockSpec(w2.shape, lambda n, p: (0, 0)),           # W2
                pl.BlockSpec(b2.shape, lambda n, p: (0, 0)),           # BN2 bias (h, 1)
            ],
            out_specs=pl.BlockSpec((None, c_out, thw), lambda n, p: (n, 0, p)),
        ),
        compiler_params=pltpu.CompilerParams(
            dimension_semantics=("parallel", "parallel"),
            vmem_limit_bytes=vmem_limit),
    )(xa, xb, w1a, w1b, b1, w2, b2)

    if HW_pad > HW:
        y = y[:, :, :HW]
    return y.reshape(N, c_out, H, W)         # already NCHW, view reshape only


# ---------------------------------------------------------------------------
# Parameter prep (fold eval-mode BN into the 1x1 convs, split W1 per input)
# ---------------------------------------------------------------------------
def fold_params(w1, g1, be1, m1, v1, w2, g2, be2, m2, v2, hidden_dim, eps=1e-5):
    inv1 = g1 / jnp.sqrt(v1 + eps)          # (2h,)
    inv2 = g2 / jnp.sqrt(v2 + eps)          # (h,)
    w1f = w1 * inv1[:, None]                # scale folded into output rows
    w2f = w2 * inv2[:, None]
    b1 = (be1 - m1 * inv1)[:, None]         # (2h, 1)
    b2 = (be2 - m2 * inv2)[:, None]         # (h, 1)
    h = hidden_dim
    return {
        "w1a": w1f[:, :h],                  # (2h, h) acts on F_dep_hu channels
        "w1b": w1f[:, h:],                  # (2h, h) acts on hv channels
        "b1": b1,
        "w2": w2f,                          # (h, 2h)
        "b2": b2,
    }


def make_params(hidden_dim=10, dtype=jnp.float32, seed=0):
    """Deterministic synthetic parameters matching the PyTorch module shapes."""
    keys = jax.random.split(jax.random.PRNGKey(seed), 10)
    c2, c1 = 2 * hidden_dim, hidden_dim

    # PyTorch conv weights are (out, in, 1, 1); stored here as (out, in).
    w1 = jax.random.normal(keys[0], (c2, c2), dtype) * 0.1
    w2 = jax.random.normal(keys[1], (c1, c2), dtype) * 0.1

    g1 = 1.0 + 0.1 * jax.random.normal(keys[2], (c2,), dtype)
    be1 = 0.1 * jax.random.normal(keys[3], (c2,), dtype)
    m1 = 0.1 * jax.random.normal(keys[4], (c2,), dtype)
    v1 = jnp.abs(jax.random.normal(keys[5], (c2,), dtype)) + 0.5

    g2 = 1.0 + 0.1 * jax.random.normal(keys[6], (c1,), dtype)
    be2 = 0.1 * jax.random.normal(keys[7], (c1,), dtype)
    m2 = 0.1 * jax.random.normal(keys[8], (c1,), dtype)
    v2 = jnp.abs(jax.random.normal(keys[9], (c1,), dtype)) + 0.5

    return fold_params(w1, g1, be1, m1, v1, w2, g2, be2, m2, v2, hidden_dim)


def _reference(F_dep_hu, hv, params):
    """Pure-JAX reference in the same channels-first orientation."""
    N, h, H, W = F_dep_hu.shape
    xa = F_dep_hu.reshape(N, h, H * W).astype(jnp.float32)
    xb = hv.reshape(N, h, H * W).astype(jnp.float32)
    t = jnp.einsum("oc,nch->noh", params["w1a"], xa) \
        + jnp.einsum("oc,nch->noh", params["w1b"], xb)
    t = jnp.maximum(t + params["b1"][None], 0.0)
    y = jnp.einsum("oc,nch->noh", params["w2"], t)
    y = jnp.maximum(y + params["b2"][None], 0.0)
    return y.reshape(N, -1, H, W)


if __name__ == "__main__":
    hidden_dim = 10
    params = make_params(hidden_dim=hidden_dim)

    key = jax.random.PRNGKey(0)
    k1, k2, k3, k4 = jax.random.split(key, 4)

    # Case 1: f32, HW multiple of 128 (no padding), grid = (N=2, tiles=1).
    N, H, W = 2, 16, 16
    F_dep_hu = jax.random.normal(k1, (N, hidden_dim, H, W), jnp.float32)
    hv = jax.random.normal(k2, (N, hidden_dim, H, W), jnp.float32)
    out = jax.block_until_ready(part_dependency_forward(F_dep_hu, hv, params))
    ref = _reference(F_dep_hu, hv, params)
    assert out.shape == (N, hidden_dim, H, W), out.shape
    assert jnp.allclose(out, ref, atol=1e-4, rtol=1e-4), "f32 mismatch vs reference"

    # Case 2: non-128-multiple spatial size (HW=300) -> padded tiles, N=1 forced
    # to 2 grid steps (keeps both v7x TensorCores busy).
    N2, H2, W2 = 1, 15, 20
    a2 = jax.random.normal(k3, (N2, hidden_dim, H2, W2), jnp.float32)
    c2 = jax.random.normal(k4, (N2, hidden_dim, H2, W2), jnp.float32)
    out2 = jax.block_until_ready(part_dependency_forward(a2, c2, params))
    ref2 = _reference(a2, c2, params)
    assert out2.shape == (N2, hidden_dim, H2, W2), out2.shape
    assert jnp.allclose(out2, ref2, atol=1e-4, rtol=1e-4), "padded-path mismatch"

    # Case 3: bf16 activation path (halves HBM traffic on this bandwidth-bound op).
    out3 = jax.block_until_ready(
        part_dependency_forward(F_dep_hu, hv, params, act_dtype=jnp.bfloat16))
    assert out3.dtype == jnp.bfloat16
    assert jnp.allclose(out3.astype(jnp.float32), ref, atol=1e-1, rtol=1e-1), \
        "bf16 path diverged"

    print("KERNEL_OK")
</pallas_src>

<mosaic_0001>
module attributes {stable_mosaic.version = 11 : i64} {
  func.func @_part_dep_kernel(%arg0: i32, %arg1: i32, %arg2: memref<1x10x256xf32, #tpu.memory_space<vmem>>, %arg3: memref<1x10x256xf32, #tpu.memory_space<vmem>>, %arg4: memref<20x10xf32, #tpu.memory_space<vmem>>, %arg5: memref<20x10xf32, #tpu.memory_space<vmem>>, %arg6: memref<20x1xf32, #tpu.memory_space<vmem>>, %arg7: memref<10x20xf32, #tpu.memory_space<vmem>>, %arg8: memref<10x1xf32, #tpu.memory_space<vmem>>, %arg9: memref<1x10x256xf32, #tpu.memory_space<vmem>>) attributes {dimension_semantics = [#tpu.dimension_semantics<parallel>, #tpu.dimension_semantics<parallel>], iteration_bounds = array<i64: 2, 1>, scalar_prefetch = 0 : i64, scratch_operands = 0 : i64, tpu.core_type = #tpu.core_type<tc>, window_params = [{transform_indices = @transform_0, window_bounds = array<i64: 1, 10, 256>}, {transform_indices = @transform_1, window_bounds = array<i64: 1, 10, 256>}, {pipeline_mode = #tpu.pipeline_mode<synchronous>, transform_indices = @transform_2, window_bounds = array<i64: 20, 10>}, {pipeline_mode = #tpu.pipeline_mode<synchronous>, transform_indices = @transform_3, window_bounds = array<i64: 20, 10>}, {pipeline_mode = #tpu.pipeline_mode<synchronous>, transform_indices = @transform_4, window_bounds = array<i64: 20, 1>}, {pipeline_mode = #tpu.pipeline_mode<synchronous>, transform_indices = @transform_5, window_bounds = array<i64: 10, 20>}, {pipeline_mode = #tpu.pipeline_mode<synchronous>, transform_indices = @transform_6, window_bounds = array<i64: 10, 1>}, {transform_indices = @transform_7, window_bounds = array<i64: 1, 10, 256>}]} {
    %c0 = arith.constant 0 : index
    %c0_0 = arith.constant 0 : index
    %c0_1 = arith.constant 0 : index
    %0 = vector.load %arg2[%c0, %c0_0, %c0_1] : memref<1x10x256xf32, #tpu.memory_space<vmem>>, vector<1x10x256xf32>
    %1 = vector.shape_cast %0 : vector<1x10x256xf32> to vector<10x256xf32>
    %c0_2 = arith.constant 0 : index
    %c0_3 = arith.constant 0 : index
    %c0_4 = arith.constant 0 : index
    %2 = vector.load %arg3[%c0_2, %c0_3, %c0_4] : memref<1x10x256xf32, #tpu.memory_space<vmem>>, vector<1x10x256xf32>
    %3 = vector.shape_cast %2 : vector<1x10x256xf32> to vector<10x256xf32>
    %c0_5 = arith.constant 0 : index
    %c0_6 = arith.constant 0 : index
    %4 = vector.load %arg4[%c0_5, %c0_6] : memref<20x10xf32, #tpu.memory_space<vmem>>, vector<20x10xf32>
    %cst = arith.constant dense<0.000000e+00> : vector<20x256xf32>
    %5 = tpu.matmul %4, %1, %cst {dimension_numbers = #tpu.dot_dimension_numbers<[1], [0], [0], [1], [0, 0, 1, 1], [], []>} : vector<20x10xf32>, vector<10x256xf32>, vector<20x256xf32> -> vector<20x256xf32>
    %c0_7 = arith.constant 0 : index
    %c0_8 = arith.constant 0 : index
    %6 = vector.load %arg5[%c0_7, %c0_8] : memref<20x10xf32, #tpu.memory_space<vmem>>, vector<20x10xf32>
    %cst_9 = arith.constant dense<0.000000e+00> : vector<20x256xf32>
    %7 = tpu.matmul %6, %3, %cst_9 {dimension_numbers = #tpu.dot_dimension_numbers<[1], [0], [0], [1], [0, 0, 1, 1], [], []>} : vector<20x10xf32>, vector<10x256xf32>, vector<20x256xf32> -> vector<20x256xf32>
    %8 = arith.addf %5, %7 : vector<20x256xf32>
    %c0_10 = arith.constant 0 : index
    %c0_11 = arith.constant 0 : index
    %9 = vector.load %arg6[%c0_10, %c0_11] : memref<20x1xf32, #tpu.memory_space<vmem>>, vector<20x1xf32>
    %10 = vector.broadcast %9 : vector<20x1xf32> to vector<20x256xf32>
    %11 = arith.addf %8, %10 : vector<20x256xf32>
    %cst_12 = arith.constant 0.000000e+00 : f32
    %12 = vector.broadcast %cst_12 : f32 to vector<20x256xf32>
    %13 = arith.maximumf %11, %12 : vector<20x256xf32>
    %c0_13 = arith.constant 0 : index
    %c0_14 = arith.constant 0 : index
    %14 = vector.load %arg7[%c0_13, %c0_14] : memref<10x20xf32, #tpu.memory_space<vmem>>, vector<10x20xf32>
    %cst_15 = arith.constant dense<0.000000e+00> : vector<10x256xf32>
    %15 = tpu.matmul %14, %13, %cst_15 {dimension_numbers = #tpu.dot_dimension_numbers<[1], [0], [0], [1], [0, 0, 1, 1], [], []>} : vector<10x20xf32>, vector<20x256xf32>, vector<10x256xf32> -> vector<10x256xf32>
    %c0_16 = arith.constant 0 : index
    %c0_17 = arith.constant 0 : index
    %16 = vector.load %arg8[%c0_16, %c0_17] : memref<10x1xf32, #tpu.memory_space<vmem>>, vector<10x1xf32>
    %17 = vector.broadcast %16 : vector<10x1xf32> to vector<10x256xf32>
    %18 = arith.addf %15, %17 : vector<10x256xf32>
    %cst_18 = arith.constant 0.000000e+00 : f32
    %19 = vector.broadcast %cst_18 : f32 to vector<10x256xf32>
    %20 = arith.maximumf %18, %19 : vector<10x256xf32>
    %c0_19 = arith.constant 0 : index
    %c0_20 = arith.constant 0 : index
    %c0_21 = arith.constant 0 : index
    %21 = vector.load %arg9[%c0_19, %c0_20, %c0_21] : memref<1x10x256xf32, #tpu.memory_space<vmem>>, vector<1x10x256xf32>
    %22 = vector.shape_cast %21 : vector<1x10x256xf32> to vector<10x256xf32>
    %23 = vector.shape_cast %20 : vector<10x256xf32> to vector<1x10x256xf32>
    tpu.vector_store %arg9[%c0_19, %c0_20, %c0_21], %23 {strides = array<i32>} : memref<1x10x256xf32, #tpu.memory_space<vmem>>, vector<1x10x256xf32>,
    return
  }
  func.func @transform_0(%arg0: i32, %arg1: i32) -> (i32, i32, i32) {
    %c0_i32 = arith.constant 0 : i32
    %c0_i32_0 = arith.constant 0 : i32
    return %arg0, %c0_i32, %arg1 : i32, i32, i32
  }
  func.func @transform_1(%arg0: i32, %arg1: i32) -> (i32, i32, i32) {
    %c0_i32 = arith.constant 0 : i32
    %c0_i32_0 = arith.constant 0 : i32
    return %arg0, %c0_i32, %arg1 : i32, i32, i32
  }
  func.func @transform_2(%arg0: i32, %arg1: i32) -> (i32, i32) {
    %c0_i32 = arith.constant 0 : i32
    %c0_i32_0 = arith.constant 0 : i32
    %c0_i32_1 = arith.constant 0 : i32
    return %c0_i32, %c0_i32_0 : i32, i32
  }
  func.func @transform_3(%arg0: i32, %arg1: i32) -> (i32, i32) {
    %c0_i32 = arith.constant 0 : i32
    %c0_i32_0 = arith.constant 0 : i32
    %c0_i32_1 = arith.constant 0 : i32
    return %c0_i32, %c0_i32_0 : i32, i32
  }
  func.func @transform_4(%arg0: i32, %arg1: i32) -> (i32, i32) {
    %c0_i32 = arith.constant 0 : i32
    %c0_i32_0 = arith.constant 0 : i32
    %c0_i32_1 = arith.constant 0 : i32
    return %c0_i32, %c0_i32_0 : i32, i32
  }
  func.func @transform_5(%arg0: i32, %arg1: i32) -> (i32, i32) {
    %c0_i32 = arith.constant 0 : i32
    %c0_i32_0 = arith.constant 0 : i32
    %c0_i32_1 = arith.constant 0 : i32
    return %c0_i32, %c0_i32_0 : i32, i32
  }
  func.func @transform_6(%arg0: i32, %arg1: i32) -> (i32, i32) {
    %c0_i32 = arith.constant 0 : i32
    %c0_i32_0 = arith.constant 0 : i32
    %c0_i32_1 = arith.constant 0 : i32
    return %c0_i32, %c0_i32_0 : i32, i32
  }
  func.func @transform_7(%arg0: i32, %arg1: i32) -> (i32, i32, i32) {
    %c0_i32 = arith.constant 0 : i32
    %c0_i32_0 = arith.constant 0 : i32
    return %arg0, %c0_i32, %arg1 : i32, i32, i32
  }
}

</mosaic_0001>

<llo_original>
// kernel: tpu_custom_call.1
$region0: #{tpu_custom_call.1}
  #allocation0 [shape = 'u32[]', space=smem, size = 0x4, offset = 0x4, fixed_abs, tag = 'smem constant byte address 0x4 - core index']
  #allocation1 [shape = 'u32[144,128]{1,0:T(1,128)}', space=vmem, size = 0x12000, scoped, tag = 'internal scratch']
  %s0 = inlined_call_operand.vmem [shape: f32[2,10,256], index: 0, kind: input, shape index: {}]
  %s1 = inlined_call_operand.vmem [shape: f32[2,10,256], index: 1, kind: input, shape index: {}]
  %s2 = inlined_call_operand.vmem [shape: f32[20,10], index: 2, kind: input, shape index: {}]
  %s3 = inlined_call_operand.vmem [shape: f32[20,10], index: 3, kind: input, shape index: {}]
  %s4 = inlined_call_operand.vmem [shape: f32[20,1], index: 4, kind: input, shape index: {}]
  %s5 = inlined_call_operand.vmem [shape: f32[10,20], index: 5, kind: input, shape index: {}]
  %s6 = inlined_call_operand.vmem [shape: f32[10,1], index: 6, kind: input, shape index: {}]
  %s7 = inlined_call_operand.vmem [shape: f32[2,10,256], index: 7, kind: output, shape index: {}]
  %s8 = sld [smem:[#allocation0]]
  $region61: #{tpu_custom_call.1} parent=0
    _
  %s10 = ssub.s32 1, %s8
  %s11 = scalar_select 0, %s10, %s8
  loop: start=0, step=1, limit=4
  $region2: #{tpu_custom_call.1} parent=0 // loop_pre_header
    _
  $region3: #{tpu_custom_call.1} parent=0 // loop_header
    %s13 = sphi 0, %s17
    %p14 = scmp.ge.s32.totalorder %s13, 4
    %s20 = sphi 0, %s32
    %s21 = sphi 0, %s28
    %s22 = sphi 0, %s20
    %s23 = sphi 0, %s21
    %s24 = sphi 0, %s22
    %s25 = sphi 0, %s23
    %s37 = sphi 0, %s39
    %s40 = sphi 0, %s37
    %s41 = sphi 0, %s40
    %s57 = sphi 0, %s41
    %s65 = sphi 0, %s67
    %s68 = sphi 0, %s65
    %s69 = sphi 0, %s68
    %s85 = sphi 0, %s69
    %s89 = sphi 0, %s89
    %s91 = sphi 0, %s89
    %s92 = sphi 0, %s91
    %s106 = sphi 0, %s92
    %s110 = sphi 0, %s110
    %s112 = sphi 0, %s110
    %s113 = sphi 0, %s112
    %s127 = sphi 0, %s113
    %s131 = sphi 0, %s131
    %s133 = sphi 0, %s131
    %s134 = sphi 0, %s133
    %s148 = sphi 0, %s134
    %s152 = sphi 0, %s152
    %s154 = sphi 0, %s152
    %s155 = sphi 0, %s154
    %s169 = sphi 0, %s155
    %s173 = sphi 0, %s173
    %s175 = sphi 0, %s173
    %s176 = sphi 0, %s175
    %s190 = sphi 0, %s176
    %s198 = sphi 0, %s200
    %s201 = sphi 0, %s198
    %s202 = sphi 0, %s201
    %s218 = sphi 0, %s202
  $region4: #{tpu_custom_call.1} parent=0 // loop_header_branch
    %16 = sbr.rel (%p14) target = $region8
  $region5: #{tpu_custom_call.1} parent=0 // loop_body
    %s18 = ssub.s32 %s13, 1
    %s19 = ssub.s32 %s13, 2
    %s26 = sadd.s32 1, %s21
    %p27 = scmp.ge.s32.totalorder %s26, 1
    %s28 = scalar_select %p27, 0, %s26
    %s29 = sadd.s32 1, %s20
    %s30 = scalar_select %p27, %s29, %s20
    %p31 = scmp.ge.s32.totalorder %s30, 2
    %s32 = scalar_select %p31, 0, %s30
    %s33 = ssub.s32 %s20, %s32
    %s34 = ssub.s32 %s21, %s28
    %s35 = sor.u32 %s33, %s34
    %p36 = scmp.eq.s32.totalorder %s35, 0
    %s38 = sadd.s32 %s37, 1
    %s39 = scalar_select %p36, %s37, %s38
    %p42 = pneg %p36
    %p43 = scmp.eq.s32.totalorder %s13, 1
    %p44 = por %p42, %p43
    %p45 = scmp.ne.s32.totalorder %s37, %s40
    %p46 = scmp.eq.s32.totalorder %s13, 0
    %p47 = por %p45, %p46
    %p48 = scmp.ne.s32.totalorder %s37, %s40
    %p49 = scmp.eq.s32.totalorder %s18, 1
    %p50 = por %p48, %p49
    %p51 = scmp.ne.s32.totalorder %s40, %s41
    %p52 = scmp.eq.s32.totalorder %s18, 0
    %p53 = por %p51, %p52
    %p54 = scmp.ne.s32.totalorder %s40, %s41
    %p55 = scmp.eq.s32.totalorder %s19, 1
    %p56 = por %p54, %p55
    %p58 = scmp.ne.s32.totalorder %s41, %s57
    %p59 = scmp.eq.s32.totalorder %s19, 0
    %p60 = por %p58, %p59
    %s61 = ssub.s32 %s20, %s32
    %s62 = ssub.s32 %s21, %s28
    %s63 = sor.u32 %s61, %s62
    %p64 = scmp.eq.s32.totalorder %s63, 0
    %s66 = sadd.s32 %s65, 1
    %s67 = scalar_select %p64, %s65, %s66
    %p70 = pneg %p64
    %p71 = scmp.eq.s32.totalorder %s13, 1
    %p72 = por %p70, %p71
    %p73 = scmp.ne.s32.totalorder %s65, %s68
    %p74 = scmp.eq.s32.totalorder %s13, 0
    %p75 = por %p73, %p74
    %p76 = scmp.ne.s32.totalorder %s65, %s68
    %p77 = scmp.eq.s32.totalorder %s18, 1
    %p78 = por %p76, %p77
    %p79 = scmp.ne.s32.totalorder %s68, %s69
    %p80 = scmp.eq.s32.totalorder %s18, 0
    %p81 = por %p79, %p80
    %p82 = scmp.ne.s32.totalorder %s68, %s69
    %p83 = scmp.eq.s32.totalorder %s19, 1
    %p84 = por %p82, %p83
    %p86 = scmp.ne.s32.totalorder %s69, %s85
    %p87 = scmp.eq.s32.totalorder %s19, 0
    %p88 = por %p86, %p87
    %s90 = sadd.s32 %s89, 1
    %p93 = scmp.eq.s32.totalorder %s13, 1
    %p94 = scmp.ne.s32.totalorder %s89, %s91
    %p95 = scmp.eq.s32.totalorder %s13, 0
    %p96 = por %p94, %p95
    %p97 = scmp.ne.s32.totalorder %s89, %s91
    %p98 = scmp.eq.s32.totalorder %s18, 1
    %p99 = por %p97, %p98
    %p100 = scmp.ne.s32.totalorder %s91, %s92
    %p101 = scmp.eq.s32.totalorder %s18, 0
    %p102 = por %p100, %p101
    %p103 = scmp.ne.s32.totalorder %s91, %s92
    %p104 = scmp.eq.s32.totalorder %s19, 1
    %p105 = por %p103, %p104
    %p107 = scmp.ne.s32.totalorder %s92, %s106
    %p108 = scmp.eq.s32.totalorder %s19, 0
    %p109 = por %p107, %p108
    %s111 = sadd.s32 %s110, 1
    %p114 = scmp.eq.s32.totalorder %s13, 1
    %p115 = scmp.ne.s32.totalorder %s110, %s112
    %p116 = scmp.eq.s32.totalorder %s13, 0
    %p117 = por %p115, %p116
    %p118 = scmp.ne.s32.totalorder %s110, %s112
    %p119 = scmp.eq.s32.totalorder %s18, 1
    %p120 = por %p118, %p119
    %p121 = scmp.ne.s32.totalorder %s112, %s113
    %p122 = scmp.eq.s32.totalorder %s18, 0
    %p123 = por %p121, %p122
    %p124 = scmp.ne.s32.totalorder %s112, %s113
    %p125 = scmp.eq.s32.totalorder %s19, 1
    %p126 = por %p124, %p125
    %p128 = scmp.ne.s32.totalorder %s113, %s127
    %p129 = scmp.eq.s32.totalorder %s19, 0
    %p130 = por %p128, %p129
    %s132 = sadd.s32 %s131, 1
    %p135 = scmp.eq.s32.totalorder %s13, 1
    %p136 = scmp.ne.s32.totalorder %s131, %s133
    %p137 = scmp.eq.s32.totalorder %s13, 0
    %p138 = por %p136, %p137
    %p139 = scmp.ne.s32.totalorder %s131, %s133
    %p140 = scmp.eq.s32.totalorder %s18, 1
    %p141 = por %p139, %p140
    %p142 = scmp.ne.s32.totalorder %s133, %s134
    %p143 = scmp.eq.s32.totalorder %s18, 0
    %p144 = por %p142, %p143
    %p145 = scmp.ne.s32.totalorder %s133, %s134
    %p146 = scmp.eq.s32.totalorder %s19, 1
    %p147 = por %p145, %p146
    %p149 = scmp.ne.s32.totalorder %s134, %s148
    %p150 = scmp.eq.s32.totalorder %s19, 0
    %p151 = por %p149, %p150
    %s153 = sadd.s32 %s152, 1
    %p156 = scmp.eq.s32.totalorder %s13, 1
    %p157 = scmp.ne.s32.totalorder %s152, %s154
    %p158 = scmp.eq.s32.totalorder %s13, 0
    %p159 = por %p157, %p158
    %p160 = scmp.ne.s32.totalorder %s152, %s154
    %p161 = scmp.eq.s32.totalorder %s18, 1
    %p162 = por %p160, %p161
    %p163 = scmp.ne.s32.totalorder %s154, %s155
    %p164 = scmp.eq.s32.totalorder %s18, 0
    %p165 = por %p163, %p164
    %p166 = scmp.ne.s32.totalorder %s154, %s155
    %p167 = scmp.eq.s32.totalorder %s19, 1
    %p168 = por %p166, %p167
    %p170 = scmp.ne.s32.totalorder %s155, %s169
    %p171 = scmp.eq.s32.totalorder %s19, 0
    %p172 = por %p170, %p171
    %s174 = sadd.s32 %s173, 1
    %p177 = scmp.eq.s32.totalorder %s13, 1
    %p178 = scmp.ne.s32.totalorder %s173, %s175
    %p179 = scmp.eq.s32.totalorder %s13, 0
    %p180 = por %p178, %p179
    %p181 = scmp.ne.s32.totalorder %s173, %s175
    %p182 = scmp.eq.s32.totalorder %s18, 1
    %p183 = por %p181, %p182
    %p184 = scmp.ne.s32.totalorder %s175, %s176
    %p185 = scmp.eq.s32.totalorder %s18, 0
    %p186 = por %p184, %p185
    %p187 = scmp.ne.s32.totalorder %s175, %s176
    %p188 = scmp.eq.s32.totalorder %s19, 1
    %p189 = por %p187, %p188
    %p191 = scmp.ne.s32.totalorder %s176, %s190
    %p192 = scmp.eq.s32.totalorder %s19, 0
    %p193 = por %p191, %p192
    %s194 = ssub.s32 %s20, %s32
    %s195 = ssub.s32 %s21, %s28
    %s196 = sor.u32 %s194, %s195
    %p197 = scmp.eq.s32.totalorder %s196, 0
    %s199 = sadd.s32 %s198, 1
    %s200 = scalar_select %p197, %s198, %s199
    %p203 = pneg %p197
    %p204 = scmp.eq.s32.totalorder %s13, 1
    %p205 = por %p203, %p204
    %p206 = scmp.ne.s32.totalorder %s198, %s201
    %p207 = scmp.eq.s32.totalorder %s13, 0
    %p208 = por %p206, %p207
    %p209 = scmp.ne.s32.totalorder %s198, %s201
    %p210 = scmp.eq.s32.totalorder %s18, 1
    %p211 = por %p209, %p210
    %p212 = scmp.ne.s32.totalorder %s201, %s202
    %p213 = scmp.eq.s32.totalorder %s18, 0
    %p214 = por %p212, %p213
    %p215 = scmp.ne.s32.totalorder %s201, %s202
    %p216 = scmp.eq.s32.totalorder %s19, 1
    %p217 = por %p215, %p216
    %p219 = scmp.ne.s32.totalorder %s202, %s218
    %p220 = scmp.eq.s32.totalorder %s19, 0
    %p221 = por %p219, %p220
    %p222 = scmp.le.s32.totalorder 1, %s13
    %p223 = scmp.lt.s32.totalorder %s13, 3
    %p224 = pnand %p222, %p223
    %p225 = pneg %p224
    // Predicated region
    $region9: #{tpu_custom_call.1} parent=5 // pred_check
      _
    $region10: #{tpu_custom_call.1} parent=5 // pred_check_branch
      %227 = sbr.rel (%p224) target = $region12
    $region11: #{tpu_custom_call.1} parent=5 // pred_region
      %s228 = ssub.s32 %s13, 1
      // Predicated region
      $region13: #{tpu_custom_call.1} parent=11 // pred_check
        %p229 = pneg %p102
      $region14: #{tpu_custom_call.1} parent=11 // pred_check_branch
        %231 = sbr.rel (%p229) target = $region16
      $region15: #{tpu_custom_call.1} parent=11 // pred_region
        _
      $region16: #{tpu_custom_call.1} parent=11 // pred_fallthru
        _
      // Predicated region
      $region17: #{tpu_custom_call.1} parent=11 // pred_check
        %p232 = pneg %p123
      $region18: #{tpu_custom_call.1} parent=11 // pred_check_branch
        %234 = sbr.rel (%p232) target = $region20
      $region19: #{tpu_custom_call.1} parent=11 // pred_region
        _
      $region20: #{tpu_custom_call.1} parent=11 // pred_fallthru
        _
      // Predicated region
      $region21: #{tpu_custom_call.1} parent=11 // pred_check
        %p235 = pneg %p144
      $region22: #{tpu_custom_call.1} parent=11 // pred_check_branch
        %237 = sbr.rel (%p235) target = $region24
      $region23: #{tpu_custom_call.1} parent=11 // pred_region
        _
      $region24: #{tpu_custom_call.1} parent=11 // pred_fallthru
        _
      // Predicated region
      $region25: #{tpu_custom_call.1} parent=11 // pred_check
        %p238 = pneg %p165
      $region26: #{tpu_custom_call.1} parent=11 // pred_check_branch
        %240 = sbr.rel (%p238) target = $region28
      $region27: #{tpu_custom_call.1} parent=11 // pred_region
        _
      $region28: #{tpu_custom_call.1} parent=11 // pred_fallthru
        _
      // Predicated region
      $region29: #{tpu_custom_call.1} parent=11 // pred_check
        %p241 = pneg %p186
      $region30: #{tpu_custom_call.1} parent=11 // pred_check_branch
        %243 = sbr.rel (%p241) target = $region32
      $region31: #{tpu_custom_call.1} parent=11 // pred_region
        _
      $region32: #{tpu_custom_call.1} parent=11 // pred_fallthru
        _
    $region12: #{tpu_custom_call.1} parent=5 // pred_fallthru
      _
    %p244 = scmp.lt.s32.totalorder %s13, 2
    // Predicated region
    $region33: #{tpu_custom_call.1} parent=5 // pred_check
      %p245 = pneg %p244
    $region34: #{tpu_custom_call.1} parent=5 // pred_check_branch
      %247 = sbr.rel (%p245) target = $region36
    $region35: #{tpu_custom_call.1} parent=5 // pred_region
      // Predicated region
      $region37: #{tpu_custom_call.1} parent=35 // pred_check
        %p248 = pneg %p47
      $region38: #{tpu_custom_call.1} parent=35 // pred_check_branch
        %250 = sbr.rel (%p248) target = $region40
      $region39: #{tpu_custom_call.1} parent=35 // pred_region
        %s251 = smul.u32 2, %s21
        %p252 = scmp.lt.s32.totalorder %s20, 1
        %s253 = scalar_select %p252, %s20, 1
        %p254 = scmp.lt.s32.totalorder %s251, 1
        %s255 = scalar_select %p254, %s251, 1
        %s256 = smul.addr %s253, 4
        %s257 = sadd.s32 %s255, %s256
        %s258 = smul.addr %s257, 8
        %s259 = scalar_lea.vmem %s0, %s258
        %s260 = smul.u32 2, %s21
      $region40: #{tpu_custom_call.1} parent=35 // pred_fallthru
        _
      // Predicated region
      $region41: #{tpu_custom_call.1} parent=35 // pred_check
        %p261 = pneg %p75
      $region42: #{tpu_custom_call.1} parent=35 // pred_check_branch
        %263 = sbr.rel (%p261) target = $region44
      $region43: #{tpu_custom_call.1} parent=35 // pred_region
        %s264 = smul.u32 2, %s21
        %p265 = scmp.lt.s32.totalorder %s20, 1
        %s266 = scalar_select %p265, %s20, 1
        %p267 = scmp.lt.s32.totalorder %s264, 1
        %s268 = scalar_select %p267, %s264, 1
        %s269 = smul.addr %s266, 4
        %s270 = sadd.s32 %s268, %s269
        %s271 = smul.addr %s270, 8
        %s272 = scalar_lea.vmem %s1, %s271
        %s273 = smul.u32 2, %s21
      $region44: #{tpu_custom_call.1} parent=35 // pred_fallthru
        _
    $region36: #{tpu_custom_call.1} parent=5 // pred_fallthru
      _
    %p274 = scmp.le.s32.totalorder 1, %s13
    %p275 = scmp.lt.s32.totalorder %s13, 3
    %p276 = pnand %p274, %p275
    %p277 = pneg %p276
    // Predicated region
    $region45: #{tpu_custom_call.1} parent=5 // pred_check
      _
    $region46: #{tpu_custom_call.1} parent=5 // pred_check_branch
      %279 = sbr.rel (%p276) target = $region48
    $region47: #{tpu_custom_call.1} parent=5 // pred_region
      %s280 = ssub.s32 %s13, 1
      %s281 = smul.u32 2, %s23
      %p282 = scmp.lt.s32.totalorder %s22, 1
      %s283 = scalar_select %p282, %s22, 1
      %p284 = scmp.lt.s32.totalorder %s281, 1
      %s285 = scalar_select %p284, %s281, 1
      %s286 = smul.addr %s283, 4
      %s287 = sadd.s32 %s285, %s286
      %s288 = smul.addr %s287, 8
      %s289 = scalar_lea.vmem %s0, %s288
      %p290 = pneg %p53
      %p291 = pneg %p50
      %s292 = smul.u32 2, %s23
      %p293 = scmp.lt.s32.totalorder %s22, 1
      %s294 = scalar_select %p293, %s22, 1
      %p295 = scmp.lt.s32.totalorder %s292, 1
      %s296 = scalar_select %p295, %s292, 1
      %s297 = smul.addr %s294, 4
      %s298 = sadd.s32 %s296, %s297
      %s299 = smul.addr %s298, 8
      %s300 = scalar_lea.vmem %s1, %s299
      %p301 = pneg %p81
      %p302 = pneg %p78
      %p303 = pneg %p102
      %p304 = pneg %p99
      %p305 = pneg %p123
      %p306 = pneg %p120
      %p307 = pneg %p144
      %p308 = pneg %p141
      %p309 = pneg %p165
      %p310 = pneg %p162
      %p311 = pneg %p186
      %p312 = pneg %p183
      %p313 = pneg %p214
      %p314 = pneg %p211
      %s315 = smul.u32 2, %s23
      %p316 = scmp.lt.s32.totalorder %s22, 1
      %s317 = scalar_select %p316, %s22, 1
      %p318 = scmp.lt.s32.totalorder %s315, 1
      %s319 = scalar_select %p318, %s315, 1
      %s320 = smul.addr %s317, 4
      %s321 = sadd.s32 %s319, %s320
      %s322 = smul.addr %s321, 8
      %s323 = scalar_lea.vmem %s7, %s322
      %s324 = smul.u32 2, %s23
      %p325 = scmp.lt.s32.totalorder %s22, 1
      %s326 = scalar_select %p325, %s22, 1
      %p327 = scmp.lt.s32.totalorder %s324, 1
      %s328 = scalar_select %p327, %s324, 1
      %s329 = smul.addr %s326, 4
      %s330 = sadd.s32 %s328, %s329
      %s331 = smul.addr %s330, 8
      %s332 = scalar_lea.vmem %s0, %s331
      %s333 = smul.u32 2, %s23
      %s334 = smul.u32 2, %s23
      %p335 = scmp.lt.s32.totalorder %s22, 1
      %s336 = scalar_select %p335, %s22, 1
      %p337 = scmp.lt.s32.totalorder %s334, 1
      %s338 = scalar_select %p337, %s334, 1
      %s339 = smul.addr %s336, 4
      %s340 = sadd.s32 %s338, %s339
      %s341 = smul.addr %s340, 8
      %s342 = scalar_lea.vmem %s1, %s341
      %s343 = smul.u32 2, %s23
      %s344 = smul.u32 2, %s23
      %p345 = scmp.lt.s32.totalorder %s22, 1
      %s346 = scalar_select %p345, %s22, 1
      %p347 = scmp.lt.s32.totalorder %s344, 1
      %s348 = scalar_select %p347, %s344, 1
      %s349 = smul.addr %s346, 4
      %s350 = sadd.s32 %s348, %s349
      %s351 = smul.addr %s350, 8
      %s352 = scalar_lea.vmem %s7, %s351
      %s353 = smul.u32 2, %s23
      %v354 = vld [vmem:[%s332] sm:$0xff]
      %v355 = vld [vmem:[%s332 + $0x8] sm:$0xff]
      %v356 = vld [vmem:[%s332 + $0x10] sm:$0x3]
      %v357 = vld [vmem:[%s332 + $0x18] sm:$0x3]
      %v358 = vld [vmem:[%s342] sm:$0xff]
      %v359 = vld [vmem:[%s342 + $0x8] sm:$0xff]
      %v360 = vld [vmem:[%s342 + $0x10] sm:$0x3]
      %v361 = vld [vmem:[%s342 + $0x18] sm:$0x3]
      %v362 = vld [vmem:[%s2] sm:$0xff]
      %v363 = vld [vmem:[%s2 + $0x8] sm:$0xff]
      %v364 = vld [vmem:[%s2 + $0x10] sm:$0xf]
      %v365 = vld [vmem:[%s3] sm:$0xff]
      %v366 = vld [vmem:[%s3 + $0x8] sm:$0xff]
      %v367 = vld [vmem:[%s3 + $0x10] sm:$0xf]
      %vm368 = vcmask 80896
      %v370 = vsel %vm368, %v365, 0
      %v373 = vsel %vm368, %v366, 0
      %v376 = vsel %vm368, %v367, 0
      %vm378 = vcmask 1041408
      %v380 = vsel %vm378, %v360, 0
      %v383 = vsel %vm378, %v361, 0
      %385 = vmatprep.subr.mxu0 0.0
      %386 = vmatpush1.msra.mxu0 0.0
      %387 = vmatprep.subr.mxu0 0.0
      %388 = vmatpush1.msra.mxu0 0.0
      %389 = vmatprep.subr.mxu0 0.0
      %390 = vmatpush1.msra.mxu0 0.0
      %391 = vmatprep.subr.mxu0 0.0
      %392 = vmatpush1.msra.mxu0 0.0
      %393 = vmatprep.subr.mxu0 0.0
      %394 = vmatpush1.msra.mxu0 0.0
      %395 = vmatprep.subr.mxu0 0.0
      %396 = vmatpush1.msra.mxu0 0.0
      %397 = vmatprep.subr.mxu0 0.0
      %398 = vmatpush1.msra.mxu0 0.0
      %399 = vmatprep.subr.mxu0 0.0
      %400 = vmatpush1.msra.mxu0 0.0
      %401 = vmatprep.subr.mxu0 0.0
      %402 = vmatpush1.msra.mxu0 0.0
      %403 = vmatprep.subr.mxu0 0.0
      %404 = vmatpush1.msra.mxu0 0.0
      %405 = vmatprep.subr.mxu0 0.0
      %406 = vmatpush1.msra.mxu0 0.0
      %407 = vmatprep.subr.mxu0 0.0
      %408 = vmatpush1.msra.mxu0 0.0
      %409 = vmatprep.subr.mxu0 0.0
      %410 = vmatpush1.msra.mxu0 0.0
      %411 = vmatprep.subr.mxu0 0.0
      %412 = vmatpush1.msra.mxu0 0.0
      %413 = vmatprep.subr.mxu0 %v383
      %414 = vmatpush1.msra.mxu0 %v380
      %415 = vmatprep.subr.mxu0 %v359
      %416 = vmatpush1.msra.mxu0 %v358
      %417 = vmatprep.subr.mxu0 0.0
      %418 = vmatpush2.msra.mxu0 0.0
      %419 = vmatprep.subr.mxu0 0.0
      %420 = vmatpush2.msra.mxu0 0.0
      %421 = vmatprep.subr.mxu0 0.0
      %422 = vmatpush2.msra.mxu0 0.0
      %423 = vmatprep.subr.mxu0 0.0
      %424 = vmatpush2.msra.mxu0 0.0
      %425 = vmatprep.subr.mxu0 0.0
      %426 = vmatpush2.msra.mxu0 0.0
      %427 = vmatprep.subr.mxu0 0.0
      %428 = vmatpush2.msra.mxu0 0.0
      %429 = vmatprep.subr.mxu0 0.0
      %430 = vmatpush2.msra.mxu0 0.0
      %431 = vmatprep.subr.mxu0 0.0
      %432 = vmatpush2.msra.mxu0 0.0
      %433 = vmatprep.subr.mxu0 0.0
      %434 = vmatpush2.msra.mxu0 0.0
      %435 = vmatprep.subr.mxu0 0.0
      %436 = vmatpush2.msra.mxu0 0.0
      %437 = vmatprep.subr.mxu0 0.0
      %438 = vmatpush2.msra.mxu0 0.0
      %439 = vmatprep.subr.mxu0 0.0
      %440 = vmatpush2.msra.mxu0 0.0
      %441 = vmatprep.subr.mxu0 0.0
      %442 = vmatpush2.msra.mxu0 0.0
      %443 = vmatprep.subr.mxu0 0.0
      %444 = vmatpush2.msra.mxu0 0.0
      %445 = vmatprep.subr.mxu0 0.0
      %446 = vmatpush2.msra.mxu0 0.0
      %447 = vmatprep.subr.mxu0 0.0
      %448 = vmatpush2.msra.mxu0 0.0
      %449 = vmatprep.mubr.f32.mxu0 0.0
      %450 = vmatmul.mubr.f32.gmra.mxu0 %v370
      %v451 = vpop.f32.mrf.mxu0
      %v452 = vadd.f32 0.0, %v451
      %v453 = vpop.f32.mrf.mxu0
      %v454 = vadd.f32 0.0, %v453
      %455 = vmatprep.mubr.f32.mxu0 0.0
      %456 = vmatmul.mubr.f32.gmra.mxu0 %v373
      %v457 = vpop.f32.mrf.mxu0
      %v458 = vadd.f32 0.0, %v457
      %v459 = vpop.f32.mrf.mxu0
      %v460 = vadd.f32 0.0, %v459
      %461 = vmatprep.mubr.f32.mxu0 0.0
      %462 = vmatmul.mubr.f32.gmra.mxu0 %v376
      %v463 = vpop.f32.mrf.mxu0
      %v464 = vadd.f32 0.0, %v463
      %v465 = vpop.f32.mrf.mxu0
      %v466 = vadd.f32 0.0, %v465
      %467 = vdwg.mxu0
      %v469 = vsel %vm368, %v362, 0
      %v472 = vsel %vm368, %v363, 0
      %v475 = vsel %vm368, %v364, 0
      %v478 = vsel %vm378, %v356, 0
      %v481 = vsel %vm378, %v357, 0
      %483 = vmatprep.subr.mxu0 0.0
      %484 = vmatpush1.msra.mxu0 0.0
      %485 = vmatprep.subr.mxu0 0.0
      %486 = vmatpush1.msra.mxu0 0.0
      %487 = vmatprep.subr.mxu0 0.0
      %488 = vmatpush1.msra.mxu0 0.0
      %489 = vmatprep.subr.mxu0 0.0
      %490 = vmatpush1.msra.mxu0 0.0
      %491 = vmatprep.subr.mxu0 0.0
      %492 = vmatpush1.msra.mxu0 0.0
      %493 = vmatprep.subr.mxu0 0.0
      %494 = vmatpush1.msra.mxu0 0.0
      %495 = vmatprep.subr.mxu0 0.0
      %496 = vmatpush1.msra.mxu0 0.0
      %497 = vmatprep.subr.mxu0 0.0
      %498 = vmatpush1.msra.mxu0 0.0
      %499 = vmatprep.subr.mxu0 0.0
      %500 = vmatpush1.msra.mxu0 0.0
      %501 = vmatprep.subr.mxu0 0.0
      %502 = vmatpush1.msra.mxu0 0.0
      %503 = vmatprep.subr.mxu0 0.0
      %504 = vmatpush1.msra.mxu0 0.0
      %505 = vmatprep.subr.mxu0 0.0
      %506 = vmatpush1.msra.mxu0 0.0
      %507 = vmatprep.subr.mxu0 0.0
      %508 = vmatpush1.msra.mxu0 0.0
      %509 = vmatprep.subr.mxu0 0.0
      %510 = vmatpush1.msra.mxu0 0.0
      %511 = vmatprep.subr.mxu0 %v481
      %512 = vmatpush1.msra.mxu0 %v478
      %513 = vmatprep.subr.mxu0 %v355
      %514 = vmatpush1.msra.mxu0 %v354
      %515 = vmatprep.subr.mxu0 0.0
      %516 = vmatpush2.msra.mxu0 0.0
      %517 = vmatprep.subr.mxu0 0.0
      %518 = vmatpush2.msra.mxu0 0.0
      %519 = vmatprep.subr.mxu0 0.0
      %520 = vmatpush2.msra.mxu0 0.0
      %521 = vmatprep.subr.mxu0 0.0
      %522 = vmatpush2.msra.mxu0 0.0
      %523 = vmatprep.subr.mxu0 0.0
      %524 = vmatpush2.msra.mxu0 0.0
      %525 = vmatprep.subr.mxu0 0.0
      %526 = vmatpush2.msra.mxu0 0.0
      %527 = vmatprep.subr.mxu0 0.0
      %528 = vmatpush2.msra.mxu0 0.0
      %529 = vmatprep.subr.mxu0 0.0
      %530 = vmatpush2.msra.mxu0 0.0
      %531 = vmatprep.subr.mxu0 0.0
      %532 = vmatpush2.msra.mxu0 0.0
      %533 = vmatprep.subr.mxu0 0.0
      %534 = vmatpush2.msra.mxu0 0.0
      %535 = vmatprep.subr.mxu0 0.0
      %536 = vmatpush2.msra.mxu0 0.0
      %537 = vmatprep.subr.mxu0 0.0
      %538 = vmatpush2.msra.mxu0 0.0
      %539 = vmatprep.subr.mxu0 0.0
      %540 = vmatpush2.msra.mxu0 0.0
      %541 = vmatprep.subr.mxu0 0.0
      %542 = vmatpush2.msra.mxu0 0.0
      %543 = vmatprep.subr.mxu0 0.0
      %544 = vmatpush2.msra.mxu0 0.0
      %545 = vmatprep.subr.mxu0 0.0
      %546 = vmatpush2.msra.mxu0 0.0
      %547 = vmatprep.mubr.f32.mxu0 0.0
      %548 = vmatmul.mubr.f32.gmra.mxu0 %v469
      %v549 = vpop.f32.mrf.mxu0
      %v550 = vadd.f32 %v452, %v549
      %v551 = vpop.f32.mrf.mxu0
      %v552 = vadd.f32 %v454, %v551
      %553 = vmatprep.mubr.f32.mxu0 0.0
      %554 = vmatmul.mubr.f32.gmra.mxu0 %v472
      %v555 = vpop.f32.mrf.mxu0
      %v556 = vadd.f32 %v458, %v555
      %v557 = vpop.f32.mrf.mxu0
      %v558 = vadd.f32 %v460, %v557
      %559 = vmatprep.mubr.f32.mxu0 0.0
      %560 = vmatmul.mubr.f32.gmra.mxu0 %v475
      %v561 = vpop.f32.mrf.mxu0
      %v562 = vadd.f32 %v464, %v561
      %v563 = vpop.f32.mrf.mxu0
      %v564 = vadd.f32 %v466, %v563
      %565 = vdwg.mxu0
      %v566 = vld [vmem:[%s4] sm:$0xff]
      %v567 = vld [vmem:[%s4 + $0x8] sm:$0xff]
      %v568 = vld [vmem:[%s4 + $0x10] sm:$0xf]
      %570 = vset.pattern.permute.xlu0 0
      %571 = vperm.xlu0 %570, %v566
      %v572 = vpop.permute.xlu0 %571
      %575 = vset.pattern.permute.xlu0 0
      %576 = vperm.xlu0 %575, %v567
      %v577 = vpop.permute.xlu0 %576
      %580 = vset.pattern.permute.xlu0 0
      %581 = vperm.xlu0 %580, %v568
      %v582 = vpop.permute.xlu0 %581
      %v584 = vadd.f32 %v550, %v572
      %v585 = vadd.f32 %v552, %v572
      %v586 = vadd.f32 %v556, %v577
      %v587 = vadd.f32 %v558, %v577
      %v588 = vadd.f32 %v562, %v582
      %v589 = vadd.f32 %v564, %v582
      %v590 = vmax.f32 %v584, 0.0
      %v591 = vmax.f32 %v585, 0.0
      %v592 = vmax.f32 %v586, 0.0
      %v593 = vmax.f32 %v587, 0.0
      %v594 = vmax.f32 %v588, 0.0
      %v595 = vmax.f32 %v589, 0.0
      %v596 = vld [vmem:[%s5] sm:$0xff]
      %v597 = vld [vmem:[%s5 + $0x8] sm:$0x3]
      %v598 = vld [vmem:[%s6] sm:$0xff]
      %v599 = vld [vmem:[%s6 + $0x8] sm:$0x3]
      %601 = vset.pattern.permute.xlu0 0
      %602 = vperm.xlu0 %601, %v598
      %v603 = vpop.permute.xlu0 %602
      %606 = vset.pattern.permute.xlu0 0
      %607 = vperm.xlu0 %606, %v599
      %v608 = vpop.permute.xlu0 %607
      %vm610 = vcmask 162816
      %v612 = vsel %vm610, %v596, 0
      %v615 = vsel %vm610, %v597, 0
      %vm617 = vcmask 1043456
      %v619 = vsel %vm617, %v594, 0
      %v622 = vsel %vm617, %v595, 0
      %624 = vmatprep.subr.mxu0 0.0
      %625 = vmatpush1.msra.mxu0 0.0
      %626 = vmatprep.subr.mxu0 0.0
      %627 = vmatpush1.msra.mxu0 0.0
      %628 = vmatprep.subr.mxu0 0.0
      %629 = vmatpush1.msra.mxu0 0.0
      %630 = vmatprep.subr.mxu0 0.0
      %631 = vmatpush1.msra.mxu0 0.0
      %632 = vmatprep.subr.mxu0 0.0
      %633 = vmatpush1.msra.mxu0 0.0
      %634 = vmatprep.subr.mxu0 0.0
      %635 = vmatpush1.msra.mxu0 0.0
      %636 = vmatprep.subr.mxu0 0.0
      %637 = vmatpush1.msra.mxu0 0.0
      %638 = vmatprep.subr.mxu0 0.0
      %639 = vmatpush1.msra.mxu0 0.0
      %640 = vmatprep.subr.mxu0 0.0
      %641 = vmatpush1.msra.mxu0 0.0
      %642 = vmatprep.subr.mxu0 0.0
      %643 = vmatpush1.msra.mxu0 0.0
      %644 = vmatprep.subr.mxu0 0.0
      %645 = vmatpush1.msra.mxu0 0.0
      %646 = vmatprep.subr.mxu0 0.0
      %647 = vmatpush1.msra.mxu0 0.0
      %648 = vmatprep.subr.mxu0 0.0
      %649 = vmatpush1.msra.mxu0 0.0
      %650 = vmatprep.subr.mxu0 %v622
      %651 = vmatpush1.msra.mxu0 %v619
      %652 = vmatprep.subr.mxu0 %v593
      %653 = vmatpush1.msra.mxu0 %v592
      %654 = vmatprep.subr.mxu0 %v591
      %655 = vmatpush1.msra.mxu0 %v590
      %656 = vmatprep.subr.mxu0 0.0
      %657 = vmatpush2.msra.mxu0 0.0
      %658 = vmatprep.subr.mxu0 0.0
      %659 = vmatpush2.msra.mxu0 0.0
      %660 = vmatprep.subr.mxu0 0.0
      %661 = vmatpush2.msra.mxu0 0.0
      %662 = vmatprep.subr.mxu0 0.0
      %663 = vmatpush2.msra.mxu0 0.0
      %664 = vmatprep.subr.mxu0 0.0
      %665 = vmatpush2.msra.mxu0 0.0
      %666 = vmatprep.subr.mxu0 0.0
      %667 = vmatpush2.msra.mxu0 0.0
      %668 = vmatprep.subr.mxu0 0.0
      %669 = vmatpush2.msra.mxu0 0.0
      %670 = vmatprep.subr.mxu0 0.0
      %671 = vmatpush2.msra.mxu0 0.0
      %672 = vmatprep.subr.mxu0 0.0
      %673 = vmatpush2.msra.mxu0 0.0
      %674 = vmatprep.subr.mxu0 0.0
      %675 = vmatpush2.msra.mxu0 0.0
      %676 = vmatprep.subr.mxu0 0.0
      %677 = vmatpush2.msra.mxu0 0.0
      %678 = vmatprep.subr.mxu0 0.0
      %679 = vmatpush2.msra.mxu0 0.0
      %680 = vmatprep.subr.mxu0 0.0
      %681 = vmatpush2.msra.mxu0 0.0
      %682 = vmatprep.subr.mxu0 0.0
      %683 = vmatpush2.msra.mxu0 0.0
      %684 = vmatprep.subr.mxu0 0.0
      %685 = vmatpush2.msra.mxu0 0.0
      %686 = vmatprep.subr.mxu0 0.0
      %687 = vmatpush2.msra.mxu0 0.0
      %688 = vmatprep.mubr.f32.mxu0 0.0
      %689 = vmatmul.mubr.f32.gmra.mxu0 %v612
      %v690 = vpop.f32.mrf.mxu0
      %v691 = vadd.f32 %v603, %v690
      %v692 = vpop.f32.mrf.mxu0
      %v693 = vadd.f32 %v603, %v692
      %694 = vmatprep.mubr.f32.mxu0 0.0
      %695 = vmatmul.mubr.f32.gmra.mxu0 %v615
      %v696 = vpop.f32.mrf.mxu0
      %v697 = vadd.f32 %v608, %v696
      %v698 = vpop.f32.mrf.mxu0
      %v699 = vadd.f32 %v608, %v698
      %700 = vdwg.mxu0
      %v701 = vmax.f32 %v691, 0.0
      %v702 = vmax.f32 %v693, 0.0
      %v703 = vmax.f32 %v697, 0.0
      %v704 = vmax.f32 %v699, 0.0
      %705 = vst [vmem:[%s352] sm:$0xff] %v701
      %706 = vst [vmem:[%s352 + $0x8] sm:$0xff] %v702
      %707 = vst [vmem:[%s352 + $0x10] sm:$0x3] %v703
      %708 = vst [vmem:[%s352 + $0x18] sm:$0x3] %v704
      %s709 = smul.u32 2, %s23
      %p710 = scmp.lt.s32.totalorder %s22, 1
      %s711 = scalar_select %p710, %s22, 1
      %p712 = scmp.lt.s32.totalorder %s709, 1
      %s713 = scalar_select %p712, %s709, 1
      %s714 = smul.addr %s711, 4
      %s715 = sadd.s32 %s713, %s714
      %s716 = smul.addr %s715, 8
      %s717 = scalar_lea.vmem %s7, %s716
      // Predicated region
      $region49: #{tpu_custom_call.1} parent=47 // pred_check
        %p718 = pneg %p211
      $region50: #{tpu_custom_call.1} parent=47 // pred_check_branch
        %720 = sbr.rel (%p718) target = $region52
      $region51: #{tpu_custom_call.1} parent=47 // pred_region
        %s721 = smul.u32 2, %s23
      $region52: #{tpu_custom_call.1} parent=47 // pred_fallthru
        _
    $region48: #{tpu_custom_call.1} parent=5 // pred_fallthru
      _
    %p722 = scmp.le.s32.totalorder 2, %s13
    // Predicated region
    $region53: #{tpu_custom_call.1} parent=5 // pred_check
      %p723 = pneg %p722
    $region54: #{tpu_custom_call.1} parent=5 // pred_check_branch
      %725 = sbr.rel (%p723) target = $region56
    $region55: #{tpu_custom_call.1} parent=5 // pred_region
      %s726 = ssub.s32 %s13, 2
      // Predicated region
      $region57: #{tpu_custom_call.1} parent=55 // pred_check
        %p727 = pneg %p217
      $region58: #{tpu_custom_call.1} parent=55 // pred_check_branch
        %729 = sbr.rel (%p727) target = $region60
      $region59: #{tpu_custom_call.1} parent=55 // pred_region
        %s730 = smul.u32 2, %s25
        %p731 = scmp.lt.s32.totalorder %s24, 1
        %s732 = scalar_select %p731, %s24, 1
        %p733 = scmp.lt.s32.totalorder %s730, 1
        %s734 = scalar_select %p733, %s730, 1
        %s735 = smul.addr %s732, 4
        %s736 = sadd.s32 %s734, %s735
        %s737 = smul.addr %s736, 8
        %s738 = scalar_lea.vmem %s7, %s737
      $region60: #{tpu_custom_call.1} parent=55 // pred_fallthru
        _
    $region56: #{tpu_custom_call.1} parent=5 // pred_fallthru
      _
  $region6: #{tpu_custom_call.1} parent=0 // loop_footer
    %s17 = sadd.s32 1, %s13
  $region7: #{tpu_custom_call.1} parent=0 // loop_footer_branch
    %12 = sbr.rel target = $region3
  $region8: #{tpu_custom_call.1} parent=0 // loop_exit
    _

</llo_original>
